<compile_context>
chip_gen: v7x
topology: tpu7x:2x2x1
jax: 0.10.0
libtpu: 0.0.40
codegen_flags: <defaults>
</compile_context>

<pallas_src>
import functools

import jax
import jax.numpy as jnp
from jax.experimental import pallas as pl
from jax.experimental.pallas import tpu as pltpu

_MIB = 1024 * 1024


def _vmem_limit_bytes():
    """Explicit scoped-VMEM budget derived from the chip's physical VMEM
    (v5e/v6e 128 MiB, v7x 64 MiB); conservative fallback if the query is
    unavailable."""
    try:
        cap = pltpu.get_tpu_info().vmem_capacity_bytes
    except Exception:
        cap = 64 * _MIB          # smallest physical VMEM of the targets (v7x)
    return int(min(cap * 3 // 4, 96 * _MIB))


def _softmax_minshift(energy):
    """softmax(max(e) - e) == softmax(min(e) - e): one reduction instead of
    two; shifted values are <= 0 with a row-max of exactly 0 (stable exp)."""
    shifted = jnp.min(energy, axis=-1, keepdims=True) - energy
    p = jnp.exp(shifted)
    denom = jnp.sum(p, axis=-1, keepdims=True)
    # EUP approx reciprocal (separate VLIW slot) + one Newton step.
    inv = pl.reciprocal(denom, approx=True)
    inv = inv * (2.0 - denom * inv)
    return p * inv


# ----------------------------- fused path ----------------------------------
def _fused_kernel(gamma_ref, x_ref, o_ref, *, mm_dtype):
    """Whole-slab path: energy -> softmax -> apply in one grid step."""
    x_f32 = x_ref[...].astype(jnp.float32)              # (BB, C, N)
    xm = x_f32.astype(mm_dtype)
    # Both operands contract on the lane (N) axis; this dot_general form does
    # not require an XLU transpose of the wide tile.
    energy = jnp.einsum("bcn,bdn->bcd", xm, xm,
                        preferred_element_type=jnp.float32)
    attn = gamma_ref[0] * _softmax_minshift(energy)      # gamma folded in
    out = jnp.einsum("bcd,bdn->bcn", attn.astype(mm_dtype), xm,
                     preferred_element_type=jnp.float32)
    o_ref[...] = (out + x_f32).astype(o_ref.dtype)


# ---------------------------- two-pass path ---------------------------------
def _energy_softmax_kernel(gamma_ref, x_ref, attn_ref, *, mm_dtype):
    """Accumulate energy = X @ X^T directly into the resident attention
    output block; softmax (+ gamma fold) in place at the last N tile."""
    k = pl.program_id(1)

    @pl.when(k == 0)
    def _init():
        attn_ref[...] = jnp.zeros_like(attn_ref)

    xm = x_ref[...].astype(mm_dtype)                     # (BB, C, tN)
    attn_ref[...] += jnp.einsum("bcn,bdn->bcd", xm, xm,
                                preferred_element_type=jnp.float32)

    @pl.when(k == pl.num_programs(1) - 1)
    def _finalize():
        attn_ref[...] = gamma_ref[0] * _softmax_minshift(attn_ref[...])


def _apply_kernel(attn_ref, x_ref, o_ref, *, mm_dtype):
    """out_tile = (gamma * attention) @ x_tile + x_tile  (gamma pre-folded)."""
    x_f32 = x_ref[...].astype(jnp.float32)
    out = jnp.einsum("bcd,bdn->bcn",
                     attn_ref[...].astype(mm_dtype), x_f32.astype(mm_dtype),
                     preferred_element_type=jnp.float32)
    o_ref[...] = (out + x_f32).astype(o_ref.dtype)


def _pick_tile_n(n_padded, C, BB, elem_bytes, target_block_bytes):
    """Largest multiple-of-128 divisor of n_padded whose (BB, C, tN) block
    stays around target_block_bytes (pass 2 holds ~6 tile-sized buffers:
    double-buffered x/out plus the small attention blocks)."""
    cap = max(128, (target_block_bytes // (BB * C * elem_bytes)) // 128 * 128)
    tn = min(n_padded, cap)
    while tn > 128 and n_padded % tn != 0:
        tn -= 128
    return tn


@functools.partial(jax.jit,
                   static_argnames=("tile_n", "fuse", "use_bf16_matmul"))
def cam_module(x, gamma, *, tile_n=None, fuse=None, use_bf16_matmul=None):
    """Channel attention matching CAM_Module.forward.
    x: (B, C, H, W, D); gamma: (1,)."""
    B, C, H, W, D = x.shape
    N = H * W * D
    x_flat = x.reshape(B, C, N)
    elem_bytes = jnp.dtype(x.dtype).itemsize

    vmem_limit = _vmem_limit_bytes()

    # bf16 MXU operands (f32 accumulation) once the matmuls dominate; at small
    # C the kernel is HBM-bound and the cast buys nothing.
    if use_bf16_matmul is None:
        use_bf16_matmul = C >= 128
    mm_dtype = jnp.bfloat16 if use_bf16_matmul else jnp.float32

    # Batch packing: only pack 2 per step when it keeps the parallel grid
    # extent >= 2 (so v7x's second TensorCore has work) and the (BB,C,C)
    # attention blocks stay modest against the VMEM budget.
    BB = 2 if (B % 2 == 0 and B >= 4) else 1
    if BB == 2 and 4 * BB * C * C * 4 > vmem_limit // 4:
        BB = 1

    slab_bytes = BB * C * N * elem_bytes
    attn_bytes = BB * C * C * 4
    if fuse is None:
        # double-buffered in+out slabs + f32 out temp + (C,C) temporaries
        fuse = (5 * slab_bytes + 4 * attn_bytes) <= vmem_limit // 2

    if fuse:
        out_flat = pl.pallas_call(
            functools.partial(_fused_kernel, mm_dtype=mm_dtype),
            out_shape=jax.ShapeDtypeStruct((B, C, N), x.dtype),
            grid=(B // BB,),
            in_specs=[
                pl.BlockSpec(memory_space=pltpu.SMEM),             # gamma (1,)
                pl.BlockSpec((BB, C, N), lambda b: (b, 0, 0)),
            ],
            out_specs=pl.BlockSpec((BB, C, N), lambda b: (b, 0, 0)),
            compiler_params=pltpu.CompilerParams(
                dimension_semantics=("parallel",),
                vmem_limit_bytes=vmem_limit),
        )(gamma, x_flat)
        return out_flat.reshape(B, C, H, W, D)

    # ---- two-pass fallback --------------------------------------------------
    # Keep tiles lane-dense: pad N up to a multiple of 128.  Zero columns are
    # exact for X@X^T and for attention@X; they are sliced off at the end.
    Np = ((N + 127) // 128) * 128
    if Np != N:
        x_flat = jnp.pad(x_flat, ((0, 0), (0, 0), (0, Np - N)))

    if tile_n is None:
        target = max(2 * _MIB, vmem_limit // 12)
        tile_n = _pick_tile_n(Np, C, BB, elem_bytes, target)
    assert Np % tile_n == 0 and tile_n % 128 == 0, (
        "tile_n must divide the (padded) N and be a multiple of 128")
    n_tiles = Np // tile_n

    # pass 1: attention(B, C, C) = gamma * softmax(min(energy) - energy),
    # accumulated directly in the output block (no VMEM scratch).
    attention = pl.pallas_call(
        functools.partial(_energy_softmax_kernel, mm_dtype=mm_dtype),
        out_shape=jax.ShapeDtypeStruct((B, C, C), jnp.float32),
        grid=(B // BB, n_tiles),
        in_specs=[
            pl.BlockSpec(memory_space=pltpu.SMEM),                    # gamma
            pl.BlockSpec((BB, C, tile_n), lambda b, k: (b, 0, k)),    # x tile
        ],
        out_specs=pl.BlockSpec((BB, C, C), lambda b, k: (b, 0, 0)),
        compiler_params=pltpu.CompilerParams(
            dimension_semantics=("parallel", "arbitrary"),
            vmem_limit_bytes=vmem_limit),
    )(gamma, x_flat)

    # pass 2: out = (gamma * attention) @ X + X, fully tile-parallel.
    out_flat = pl.pallas_call(
        functools.partial(_apply_kernel, mm_dtype=mm_dtype),
        out_shape=jax.ShapeDtypeStruct((B, C, Np), x.dtype),
        grid=(B // BB, n_tiles),
        in_specs=[
            pl.BlockSpec((BB, C, C), lambda b, k: (b, 0, 0)),         # attn
            pl.BlockSpec((BB, C, tile_n), lambda b, k: (b, 0, k)),    # x tile
        ],
        out_specs=pl.BlockSpec((BB, C, tile_n), lambda b, k: (b, 0, k)),
        compiler_params=pltpu.CompilerParams(
            dimension_semantics=("parallel", "parallel"),
            vmem_limit_bytes=vmem_limit),
    )(attention, x_flat)

    if Np != N:
        out_flat = out_flat[:, :, :N]
    return out_flat.reshape(B, C, H, W, D)


def cam_reference(x, gamma):
    """Plain-JAX reference mirroring the PyTorch forward."""
    B, C, H, W, D = x.shape
    q = x.reshape(B, C, -1)
    energy = jnp.einsum("bcn,bdn->bcd", q, q,
                        precision=jax.lax.Precision.HIGHEST)
    energy_new = jnp.max(energy, axis=-1, keepdims=True) - energy
    attention = jax.nn.softmax(energy_new, axis=-1)
    out = jnp.einsum("bcd,bdn->bcn", attention, q,
                     precision=jax.lax.Precision.HIGHEST).reshape(B, C, H, W, D)
    return gamma[0] * out + x


if __name__ == "__main__":
    key = jax.random.PRNGKey(0)
    B, C, H, W, D = 2, 4, 16, 16, 8                       # N = H*W*D = 2048
    x = 0.1 * jax.random.normal(key, (B, C, H, W, D), dtype=jnp.float32)
    # Nonzero gamma so the whole attention path is numerically exercised
    # (PyTorch init is zeros, which would reduce the output to just x).
    gamma = jnp.array([0.7], dtype=jnp.float32)
    ref = cam_reference(x, gamma)

    # Fused single-pass path (auto-selected: slab fits VMEM).
    out_fused = jax.block_until_ready(cam_module(x, gamma))
    assert out_fused.shape == (B, C, H, W, D)
    # Tolerance covers the MXU's multi-pass f32 matmuls vs the HIGHEST-precision
    # XLA reference.
    assert jnp.allclose(out_fused, ref, atol=5e-3, rtol=5e-3), float(
        jnp.max(jnp.abs(out_fused - ref)))

    # Two-pass tiled path (tile_n=512 -> 4 N tiles: exercises the
    # accumulate-in-output + softmax-in-place finalize).
    out_two = jax.block_until_ready(cam_module(x, gamma, fuse=False, tile_n=512))
    assert jnp.allclose(out_two, ref, atol=5e-3, rtol=5e-3), float(
        jnp.max(jnp.abs(out_two - ref)))

    # gamma = 0 must reduce to the identity (residual path is exact).
    zero = jnp.zeros((1,), jnp.float32)
    out0_fused = jax.block_until_ready(cam_module(x, zero))
    out0_two = jax.block_until_ready(
        cam_module(x, zero, fuse=False, tile_n=512))
    assert jnp.allclose(out0_fused, x, atol=1e-6, rtol=0.0)
    assert jnp.allclose(out0_two, x, atol=1e-6, rtol=0.0)

    # Ragged N (not a multiple of 128): two-pass path pads to 128, tiles, and
    # slices the padding off — exercises the robustness fix.
    xr = 0.1 * jax.random.normal(jax.random.PRNGKey(1), (2, 4, 6, 5, 7),
                                 dtype=jnp.float32)       # N = 210 -> pad 256
    out_r = jax.block_until_ready(cam_module(xr, gamma, fuse=False, tile_n=128))
    ref_r = cam_reference(xr, gamma)
    assert jnp.allclose(out_r, ref_r, atol=5e-3, rtol=5e-3), float(
        jnp.max(jnp.abs(out_r - ref_r)))

    print("KERNEL_OK")
</pallas_src>

<mosaic_0001>
module attributes {stable_mosaic.version = 11 : i64} {
  func.func @_fused_kernel(%arg0: i32, %arg1: memref<1xf32, #tpu.memory_space<smem>>, %arg2: memref<1x4x2048xf32, #tpu.memory_space<vmem>>, %arg3: memref<1x4x2048xf32, #tpu.memory_space<vmem>>) attributes {dimension_semantics = [#tpu.dimension_semantics<parallel>], iteration_bounds = array<i64: 2>, scalar_prefetch = 0 : i64, scratch_operands = 0 : i64, tpu.core_type = #tpu.core_type<tc>, window_params = [{transform_indices = @transform_0, window_bounds = array<i64: 1>}, {transform_indices = @transform_1, window_bounds = array<i64: 1, 4, 2048>}, {transform_indices = @transform_2, window_bounds = array<i64: 1, 4, 2048>}]} {
    %c0 = arith.constant 0 : index
    %c0_0 = arith.constant 0 : index
    %c0_1 = arith.constant 0 : index
    %0 = vector.load %arg2[%c0, %c0_0, %c0_1] : memref<1x4x2048xf32, #tpu.memory_space<vmem>>, vector<1x4x2048xf32>
    "tpu.trace_start"() <{level = 10 : i32, message = "bcn,bdn->bcd"}> : () -> ()
    %cst = arith.constant dense<0.000000e+00> : vector<1x4x4xf32>
    %1 = tpu.matmul %0, %0, %cst {dimension_numbers = #tpu.dot_dimension_numbers<[2], [2], [1], [1], [0, 0, 0, 1, 1, 1], [0], [0]>} : vector<1x4x2048xf32>, vector<1x4x2048xf32>, vector<1x4x4xf32> -> vector<1x4x4xf32>
    "tpu.trace_stop"() : () -> ()
    %c0_2 = arith.constant 0 : index
    %2 = memref.load %arg1[%c0_2] : memref<1xf32, #tpu.memory_space<smem>>
    %cst_3 = arith.constant dense<0x7F800000> : vector<1x4xf32>
    %3 = vector.multi_reduction <minimumf>, %1, %cst_3 [2] : vector<1x4x4xf32> to vector<1x4xf32>
    %4 = vector.shape_cast %3 : vector<1x4xf32> to vector<1x4x1xf32>
    %5 = vector.broadcast %4 : vector<1x4x1xf32> to vector<1x4x4xf32>
    %6 = arith.subf %5, %1 : vector<1x4x4xf32>
    %7 = math.exp %6 : vector<1x4x4xf32>
    %cst_4 = arith.constant dense<0.000000e+00> : vector<1x4xf32>
    %8 = vector.multi_reduction <add>, %7, %cst_4 [2] : vector<1x4x4xf32> to vector<1x4xf32>
    %9 = vector.shape_cast %8 : vector<1x4xf32> to vector<1x4x1xf32>
    %10 = tpu.reciprocal %9 {approx = true} : vector<1x4x1xf32> -> vector<1x4x1xf32>
    %11 = arith.mulf %9, %10 : vector<1x4x1xf32>
    %cst_5 = arith.constant 2.000000e+00 : f32
    %12 = vector.broadcast %cst_5 : f32 to vector<1x4x1xf32>
    %13 = arith.subf %12, %11 : vector<1x4x1xf32>
    %14 = arith.mulf %10, %13 : vector<1x4x1xf32>
    %15 = vector.broadcast %14 : vector<1x4x1xf32> to vector<1x4x4xf32>
    %16 = arith.mulf %7, %15 : vector<1x4x4xf32>
    %17 = vector.broadcast %2 : f32 to vector<1x4x4xf32>
    %18 = arith.mulf %17, %16 : vector<1x4x4xf32>
    "tpu.trace_start"() <{level = 10 : i32, message = "bcd,bdn->bcn"}> : () -> ()
    %cst_6 = arith.constant dense<0.000000e+00> : vector<1x4x2048xf32>
    %19 = tpu.matmul %18, %0, %cst_6 {dimension_numbers = #tpu.dot_dimension_numbers<[2], [1], [1], [2], [0, 0, 0, 1, 1, 2], [0], [0]>} : vector<1x4x4xf32>, vector<1x4x2048xf32>, vector<1x4x2048xf32> -> vector<1x4x2048xf32>
    "tpu.trace_stop"() : () -> ()
    %20 = arith.addf %19, %0 : vector<1x4x2048xf32>
    %c0_7 = arith.constant 0 : index
    %c0_8 = arith.constant 0 : index
    %c0_9 = arith.constant 0 : index
    %21 = vector.load %arg3[%c0_7, %c0_8, %c0_9] : memref<1x4x2048xf32, #tpu.memory_space<vmem>>, vector<1x4x2048xf32>
    tpu.vector_store %arg3[%c0_7, %c0_8, %c0_9], %20 {strides = array<i32>} : memref<1x4x2048xf32, #tpu.memory_space<vmem>>, vector<1x4x2048xf32>,
    return
  }
  func.func @transform_0(%arg0: i32) -> i32 {
    %c0_i32 = arith.constant 0 : i32
    %c0_i32_0 = arith.constant 0 : i32
    return %c0_i32 : i32
  }
  func.func @transform_1(%arg0: i32) -> (i32, i32, i32) {
    %c0_i32 = arith.constant 0 : i32
    %c0_i32_0 = arith.constant 0 : i32
    %c0_i32_1 = arith.constant 0 : i32
    return %arg0, %c0_i32, %c0_i32_0 : i32, i32, i32
  }
  func.func @transform_2(%arg0: i32) -> (i32, i32, i32) {
    %c0_i32 = arith.constant 0 : i32
    %c0_i32_0 = arith.constant 0 : i32
    %c0_i32_1 = arith.constant 0 : i32
    return %arg0, %c0_i32, %c0_i32_0 : i32, i32, i32
  }
}

</mosaic_0001>

<llo_original>
// kernel: cam_module.1
$region0: #{cam_module.1}
  #allocation0 [shape = 'u32[]', space=smem, size = 0x4, offset = 0x4, fixed_abs, tag = 'smem constant byte address 0x4 - core index']
  #allocation1 [shape = 'u32[144,128]{1,0:T(1,128)}', space=vmem, size = 0x12000, scoped, tag = 'internal scratch']
  #allocation2 [shape = 'f32[1]{0:T(128)S(6)}', space=smem, size = 0x200, scoped, tag = 'scoped memory for cam_module.1']
  %s0 = inlined_call_operand.<no memory space> [shape: f32[1], index: 0, kind: input, shape index: {}]
  %s1 = inlined_call_operand.vmem [shape: f32[2,4,2048], index: 1, kind: input, shape index: {}]
  %s2 = inlined_call_operand.vmem [shape: f32[2,4,2048], index: 2, kind: output, shape index: {}]
  %s3 = sld [smem:[#allocation0]]
  $region41: #{cam_module.1} parent=0
    _
  %s5 = ssub.s32 1, %s3
  %s6 = scalar_select 0, %s5, %s3
  %7 = sst [smem:[#allocation2]] %s0
  loop: start=0, step=1, limit=4
  $region2: #{cam_module.1} parent=0 // loop_pre_header
    _
  $region3: #{cam_module.1} parent=0 // loop_header
    %s9 = sphi 0, %s13
    %p10 = scmp.ge.s32.totalorder %s9, 4
    %s17 = sphi 0, %s17
    %s19 = sphi 0, %s17
    %s20 = sphi 0, %s19
    %s34 = sphi 0, %s20
    %s40 = sphi 0, %s42
    %s43 = sphi 0, %s40
    %s44 = sphi 0, %s43
    %s60 = sphi 0, %s44
    %s66 = sphi 0, %s68
    %s69 = sphi 0, %s66
    %s70 = sphi 0, %s69
    %s86 = sphi 0, %s70
  $region4: #{cam_module.1} parent=0 // loop_header_branch
    %12 = sbr.rel (%p10) target = $region8
  $region5: #{cam_module.1} parent=0 // loop_body
    %s14 = ssub.s32 %s9, 1
    %s15 = ssub.s32 %s9, 2
    %s16 = sadd.s32 %s9, 1
    %s18 = sadd.s32 %s17, 1
    %p21 = scmp.eq.s32.totalorder %s9, 1
    %p22 = scmp.ne.s32.totalorder %s17, %s19
    %p23 = scmp.eq.s32.totalorder %s9, 0
    %p24 = por %p22, %p23
    %p25 = scmp.ne.s32.totalorder %s17, %s19
    %p26 = scmp.eq.s32.totalorder %s14, 1
    %p27 = por %p25, %p26
    %p28 = scmp.ne.s32.totalorder %s19, %s20
    %p29 = scmp.eq.s32.totalorder %s14, 0
    %p30 = por %p28, %p29
    %p31 = scmp.ne.s32.totalorder %s19, %s20
    %p32 = scmp.eq.s32.totalorder %s15, 1
    %p33 = por %p31, %p32
    %p35 = scmp.ne.s32.totalorder %s20, %s34
    %p36 = scmp.eq.s32.totalorder %s15, 0
    %p37 = por %p35, %p36
    %s38 = ssub.s32 %s9, %s16
    %p39 = scmp.eq.s32.totalorder %s38, 0
    %s41 = sadd.s32 %s40, 1
    %s42 = scalar_select %p39, %s40, %s41
    %p45 = pneg %p39
    %p46 = scmp.eq.s32.totalorder %s9, 1
    %p47 = por %p45, %p46
    %p48 = scmp.ne.s32.totalorder %s40, %s43
    %p49 = scmp.eq.s32.totalorder %s9, 0
    %p50 = por %p48, %p49
    %p51 = scmp.ne.s32.totalorder %s40, %s43
    %p52 = scmp.eq.s32.totalorder %s14, 1
    %p53 = por %p51, %p52
    %p54 = scmp.ne.s32.totalorder %s43, %s44
    %p55 = scmp.eq.s32.totalorder %s14, 0
    %p56 = por %p54, %p55
    %p57 = scmp.ne.s32.totalorder %s43, %s44
    %p58 = scmp.eq.s32.totalorder %s15, 1
    %p59 = por %p57, %p58
    %p61 = scmp.ne.s32.totalorder %s44, %s60
    %p62 = scmp.eq.s32.totalorder %s15, 0
    %p63 = por %p61, %p62
    %s64 = ssub.s32 %s9, %s16
    %p65 = scmp.eq.s32.totalorder %s64, 0
    %s67 = sadd.s32 %s66, 1
    %s68 = scalar_select %p65, %s66, %s67
    %p71 = pneg %p65
    %p72 = scmp.eq.s32.totalorder %s9, 1
    %p73 = por %p71, %p72
    %p74 = scmp.ne.s32.totalorder %s66, %s69
    %p75 = scmp.eq.s32.totalorder %s9, 0
    %p76 = por %p74, %p75
    %p77 = scmp.ne.s32.totalorder %s66, %s69
    %p78 = scmp.eq.s32.totalorder %s14, 1
    %p79 = por %p77, %p78
    %p80 = scmp.ne.s32.totalorder %s69, %s70
    %p81 = scmp.eq.s32.totalorder %s14, 0
    %p82 = por %p80, %p81
    %p83 = scmp.ne.s32.totalorder %s69, %s70
    %p84 = scmp.eq.s32.totalorder %s15, 1
    %p85 = por %p83, %p84
    %p87 = scmp.ne.s32.totalorder %s70, %s86
    %p88 = scmp.eq.s32.totalorder %s15, 0
    %p89 = por %p87, %p88
    %p90 = scmp.le.s32.totalorder 1, %s9
    %p91 = scmp.lt.s32.totalorder %s9, 3
    %p92 = pnand %p90, %p91
    %p93 = pneg %p92
    // Predicated region
    $region9: #{cam_module.1} parent=5 // pred_check
      _
    $region10: #{cam_module.1} parent=5 // pred_check_branch
      %95 = sbr.rel (%p92) target = $region12
    $region11: #{cam_module.1} parent=5 // pred_region
      %s96 = ssub.s32 %s9, 1
      // Predicated region
      $region13: #{cam_module.1} parent=11 // pred_check
        %p97 = pneg %p30
      $region14: #{cam_module.1} parent=11 // pred_check_branch
        %99 = sbr.rel (%p97) target = $region16
      $region15: #{cam_module.1} parent=11 // pred_region
        _
      $region16: #{cam_module.1} parent=11 // pred_fallthru
        _
    $region12: #{cam_module.1} parent=5 // pred_fallthru
      _
    %p100 = scmp.lt.s32.totalorder %s9, 2
    // Predicated region
    $region17: #{cam_module.1} parent=5 // pred_check
      %p101 = pneg %p100
    $region18: #{cam_module.1} parent=5 // pred_check_branch
      %103 = sbr.rel (%p101) target = $region20
    $region19: #{cam_module.1} parent=5 // pred_region
      // Predicated region
      $region21: #{cam_module.1} parent=19 // pred_check
        %p104 = pneg %p50
      $region22: #{cam_module.1} parent=19 // pred_check_branch
        %106 = sbr.rel (%p104) target = $region24
      $region23: #{cam_module.1} parent=19 // pred_region
        %p107 = scmp.lt.s32.totalorder %s9, 1
        %s108 = scalar_select %p107, %s9, 1
        %s109 = smul.addr %s108, 16
        %s110 = smul.addr %s109, 4
        %s111 = scalar_lea.vmem %s1, %s110
      $region24: #{cam_module.1} parent=19 // pred_fallthru
        _
    $region20: #{cam_module.1} parent=5 // pred_fallthru
      _
    %p112 = scmp.le.s32.totalorder 1, %s9
    %p113 = scmp.lt.s32.totalorder %s9, 3
    %p114 = pnand %p112, %p113
    %p115 = pneg %p114
    // Predicated region
    $region25: #{cam_module.1} parent=5 // pred_check
      _
    $region26: #{cam_module.1} parent=5 // pred_check_branch
      %117 = sbr.rel (%p114) target = $region28
    $region27: #{cam_module.1} parent=5 // pred_region
      %s118 = ssub.s32 %s9, 1
      %p119 = pneg %p30
      %p120 = pneg %p27
      %p121 = scmp.lt.s32.totalorder %s14, 1
      %s122 = scalar_select %p121, %s14, 1
      %s123 = smul.addr %s122, 16
      %s124 = smul.addr %s123, 4
      %s125 = scalar_lea.vmem %s1, %s124
      %p126 = pneg %p56
      %p127 = pneg %p53
      %p128 = pneg %p82
      %p129 = pneg %p79
      %p130 = scmp.lt.s32.totalorder %s14, 1
      %s131 = scalar_select %p130, %s14, 1
      %s132 = smul.addr %s131, 16
      %s133 = smul.addr %s132, 4
      %s134 = scalar_lea.vmem %s2, %s133
      %p135 = scmp.lt.s32.totalorder %s14, 1
      %s136 = scalar_select %p135, %s14, 1
      %s137 = smul.addr %s136, 16
      %s138 = smul.addr %s137, 4
      %s139 = scalar_lea.vmem %s1, %s138
      %p140 = scmp.lt.s32.totalorder %s14, 1
      %s141 = scalar_select %p140, %s14, 1
      %s142 = smul.addr %s141, 16
      %s143 = smul.addr %s142, 4
      %s144 = scalar_lea.vmem %s2, %s143
      %v145 = vld [vmem:[%s139] sm:$0xff]
      %v146 = vld [vmem:[%s139 + $0x8] sm:$0xff]
      %v147 = vld [vmem:[%s139 + $0x10] sm:$0xff]
      %v148 = vld [vmem:[%s139 + $0x18] sm:$0xff]
      %v149 = vld [vmem:[%s139 + $0x20] sm:$0xff]
      %v150 = vld [vmem:[%s139 + $0x28] sm:$0xff]
      %v151 = vld [vmem:[%s139 + $0x30] sm:$0xff]
      %v152 = vld [vmem:[%s139 + $0x38] sm:$0xff]
      %v161 = vcombine.high %v145, %v145
      %v162 = vcombine.high %v146, %v146
      %v163 = vcombine.high %v147, %v147
      %v164 = vcombine.high %v148, %v148
      %v165 = vcombine.high %v149, %v149
      %v166 = vcombine.high %v150, %v150
      %v167 = vcombine.high %v151, %v151
      %v168 = vcombine.high %v152, %v152
      %177 = vmatprep.subr.mxu0 %v161
      %178 = vmatpush1.xpose.msra.mxu0 %v145
      %179 = vmatprep.subr.mxu0 0.0
      %180 = vmatpush1.xpose.msra.mxu0 0.0
      %181 = vmatprep.subr.mxu0 0.0
      %182 = vmatpush1.xpose.msra.mxu0 0.0
      %183 = vmatprep.subr.mxu0 0.0
      %184 = vmatpush1.xpose.msra.mxu0 0.0
      %185 = vmatprep.subr.mxu0 0.0
      %186 = vmatpush1.xpose.msra.mxu0 0.0
      %187 = vmatprep.subr.mxu0 0.0
      %188 = vmatpush1.xpose.msra.mxu0 0.0
      %189 = vmatprep.subr.mxu0 0.0
      %190 = vmatpush1.xpose.msra.mxu0 0.0
      %191 = vmatprep.subr.mxu0 0.0
      %192 = vmatpush1.xpose.msra.mxu0 0.0
      %193 = vmatprep.subr.mxu0 0.0
      %194 = vmatpush1.xpose.msra.mxu0 0.0
      %195 = vmatprep.subr.mxu0 0.0
      %196 = vmatpush1.xpose.msra.mxu0 0.0
      %197 = vmatprep.subr.mxu0 0.0
      %198 = vmatpush1.xpose.msra.mxu0 0.0
      %199 = vmatprep.subr.mxu0 0.0
      %200 = vmatpush1.xpose.msra.mxu0 0.0
      %201 = vmatprep.subr.mxu0 0.0
      %202 = vmatpush1.xpose.msra.mxu0 0.0
      %203 = vmatprep.subr.mxu0 0.0
      %204 = vmatpush1.xpose.msra.mxu0 0.0
      %205 = vmatprep.subr.mxu0 0.0
      %206 = vmatpush1.xpose.msra.mxu0 0.0
      %207 = vmatprep.subr.mxu0 0.0
      %208 = vmatpush1.xpose.msra.mxu0 0.0
      %209 = vmatprep.subr.mxu0 0.0
      %210 = vmatpush1.xpose.msra.mxu0 0.0
      %211 = vmatprep.subr.mxu0 0.0
      %212 = vmatpush1.xpose.msra.mxu0 0.0
      %213 = vmatprep.subr.mxu0 0.0
      %214 = vmatpush1.xpose.msra.mxu0 0.0
      %215 = vmatprep.subr.mxu0 0.0
      %216 = vmatpush1.xpose.msra.mxu0 0.0
      %217 = vmatprep.subr.mxu0 0.0
      %218 = vmatpush1.xpose.msra.mxu0 0.0
      %219 = vmatprep.subr.mxu0 0.0
      %220 = vmatpush1.xpose.msra.mxu0 0.0
      %221 = vmatprep.subr.mxu0 0.0
      %222 = vmatpush1.xpose.msra.mxu0 0.0
      %223 = vmatprep.subr.mxu0 0.0
      %224 = vmatpush1.xpose.msra.mxu0 0.0
      %225 = vmatprep.subr.mxu0 0.0
      %226 = vmatpush1.xpose.msra.mxu0 0.0
      %227 = vmatprep.subr.mxu0 0.0
      %228 = vmatpush1.xpose.msra.mxu0 0.0
      %229 = vmatprep.subr.mxu0 0.0
      %230 = vmatpush1.xpose.msra.mxu0 0.0
      %231 = vmatprep.subr.mxu0 0.0
      %232 = vmatpush1.xpose.msra.mxu0 0.0
      %233 = vmatprep.subr.mxu0 0.0
      %234 = vmatpush1.xpose.msra.mxu0 0.0
      %235 = vmatprep.subr.mxu0 0.0
      %236 = vmatpush1.xpose.msra.mxu0 0.0
      %237 = vmatprep.subr.mxu0 0.0
      %238 = vmatpush1.xpose.msra.mxu0 0.0
      %239 = vmatprep.subr.mxu0 0.0
      %240 = vmatpush1.xpose.msra.mxu0 0.0
      %241 = vmatprep.mubr.f32.mxu0 %v161
      %242 = vmatmul.mubr.f32.gmra.mrb[0].mxu0 %v145
      %v243 = vpop.f32.mrb[0].mxu0
      %v244 = vadd.f32 0.0, %v243
      %v245 = vpop.f32.mrb[0].mxu0
      %246 = vdwg.mxu0
      %247 = vmatprep.subr.mxu0 %v162
      %248 = vmatpush1.xpose.msra.mxu0 %v146
      %249 = vmatprep.subr.mxu0 0.0
      %250 = vmatpush1.xpose.msra.mxu0 0.0
      %251 = vmatprep.subr.mxu0 0.0
      %252 = vmatpush1.xpose.msra.mxu0 0.0
      %253 = vmatprep.subr.mxu0 0.0
      %254 = vmatpush1.xpose.msra.mxu0 0.0
      %255 = vmatprep.subr.mxu0 0.0
      %256 = vmatpush1.xpose.msra.mxu0 0.0
      %257 = vmatprep.subr.mxu0 0.0
      %258 = vmatpush1.xpose.msra.mxu0 0.0
      %259 = vmatprep.subr.mxu0 0.0
      %260 = vmatpush1.xpose.msra.mxu0 0.0
      %261 = vmatprep.subr.mxu0 0.0
      %262 = vmatpush1.xpose.msra.mxu0 0.0
      %263 = vmatprep.subr.mxu0 0.0
      %264 = vmatpush1.xpose.msra.mxu0 0.0
      %265 = vmatprep.subr.mxu0 0.0
      %266 = vmatpush1.xpose.msra.mxu0 0.0
      %267 = vmatprep.subr.mxu0 0.0
      %268 = vmatpush1.xpose.msra.mxu0 0.0
      %269 = vmatprep.subr.mxu0 0.0
      %270 = vmatpush1.xpose.msra.mxu0 0.0
      %271 = vmatprep.subr.mxu0 0.0
      %272 = vmatpush1.xpose.msra.mxu0 0.0
      %273 = vmatprep.subr.mxu0 0.0
      %274 = vmatpush1.xpose.msra.mxu0 0.0
      %275 = vmatprep.subr.mxu0 0.0
      %276 = vmatpush1.xpose.msra.mxu0 0.0
      %277 = vmatprep.subr.mxu0 0.0
      %278 = vmatpush1.xpose.msra.mxu0 0.0
      %279 = vmatprep.subr.mxu0 0.0
      %280 = vmatpush1.xpose.msra.mxu0 0.0
      %281 = vmatprep.subr.mxu0 0.0
      %282 = vmatpush1.xpose.msra.mxu0 0.0
      %283 = vmatprep.subr.mxu0 0.0
      %284 = vmatpush1.xpose.msra.mxu0 0.0
      %285 = vmatprep.subr.mxu0 0.0
      %286 = vmatpush1.xpose.msra.mxu0 0.0
      %287 = vmatprep.subr.mxu0 0.0
      %288 = vmatpush1.xpose.msra.mxu0 0.0
      %289 = vmatprep.subr.mxu0 0.0
      %290 = vmatpush1.xpose.msra.mxu0 0.0
      %291 = vmatprep.subr.mxu0 0.0
      %292 = vmatpush1.xpose.msra.mxu0 0.0
      %293 = vmatprep.subr.mxu0 0.0
      %294 = vmatpush1.xpose.msra.mxu0 0.0
      %295 = vmatprep.subr.mxu0 0.0
      %296 = vmatpush1.xpose.msra.mxu0 0.0
      %297 = vmatprep.subr.mxu0 0.0
      %298 = vmatpush1.xpose.msra.mxu0 0.0
      %299 = vmatprep.subr.mxu0 0.0
      %300 = vmatpush1.xpose.msra.mxu0 0.0
      %301 = vmatprep.subr.mxu0 0.0
      %302 = vmatpush1.xpose.msra.mxu0 0.0
      %303 = vmatprep.subr.mxu0 0.0
      %304 = vmatpush1.xpose.msra.mxu0 0.0
      %305 = vmatprep.subr.mxu0 0.0
      %306 = vmatpush1.xpose.msra.mxu0 0.0
      %307 = vmatprep.subr.mxu0 0.0
      %308 = vmatpush1.xpose.msra.mxu0 0.0
      %309 = vmatprep.subr.mxu0 0.0
      %310 = vmatpush1.xpose.msra.mxu0 0.0
      %311 = vmatprep.mubr.f32.mxu0 %v162
      %312 = vmatmul.mubr.f32.gmra.mrb[0].mxu0 %v146
      %v313 = vpop.f32.mrb[0].mxu0
      %v314 = vadd.f32 %v244, %v313
      %v315 = vpop.f32.mrb[0].mxu0
      %316 = vdwg.mxu0
      %317 = vmatprep.subr.mxu0 %v163
      %318 = vmatpush1.xpose.msra.mxu0 %v147
      %319 = vmatprep.subr.mxu0 0.0
      %320 = vmatpush1.xpose.msra.mxu0 0.0
      %321 = vmatprep.subr.mxu0 0.0
      %322 = vmatpush1.xpose.msra.mxu0 0.0
      %323 = vmatprep.subr.mxu0 0.0
      %324 = vmatpush1.xpose.msra.mxu0 0.0
      %325 = vmatprep.subr.mxu0 0.0
      %326 = vmatpush1.xpose.msra.mxu0 0.0
      %327 = vmatprep.subr.mxu0 0.0
      %328 = vmatpush1.xpose.msra.mxu0 0.0
      %329 = vmatprep.subr.mxu0 0.0
      %330 = vmatpush1.xpose.msra.mxu0 0.0
      %331 = vmatprep.subr.mxu0 0.0
      %332 = vmatpush1.xpose.msra.mxu0 0.0
      %333 = vmatprep.subr.mxu0 0.0
      %334 = vmatpush1.xpose.msra.mxu0 0.0
      %335 = vmatprep.subr.mxu0 0.0
      %336 = vmatpush1.xpose.msra.mxu0 0.0
      %337 = vmatprep.subr.mxu0 0.0
      %338 = vmatpush1.xpose.msra.mxu0 0.0
      %339 = vmatprep.subr.mxu0 0.0
      %340 = vmatpush1.xpose.msra.mxu0 0.0
      %341 = vmatprep.subr.mxu0 0.0
      %342 = vmatpush1.xpose.msra.mxu0 0.0
      %343 = vmatprep.subr.mxu0 0.0
      %344 = vmatpush1.xpose.msra.mxu0 0.0
      %345 = vmatprep.subr.mxu0 0.0
      %346 = vmatpush1.xpose.msra.mxu0 0.0
      %347 = vmatprep.subr.mxu0 0.0
      %348 = vmatpush1.xpose.msra.mxu0 0.0
      %349 = vmatprep.subr.mxu0 0.0
      %350 = vmatpush1.xpose.msra.mxu0 0.0
      %351 = vmatprep.subr.mxu0 0.0
      %352 = vmatpush1.xpose.msra.mxu0 0.0
      %353 = vmatprep.subr.mxu0 0.0
      %354 = vmatpush1.xpose.msra.mxu0 0.0
      %355 = vmatprep.subr.mxu0 0.0
      %356 = vmatpush1.xpose.msra.mxu0 0.0
      %357 = vmatprep.subr.mxu0 0.0
      %358 = vmatpush1.xpose.msra.mxu0 0.0
      %359 = vmatprep.subr.mxu0 0.0
      %360 = vmatpush1.xpose.msra.mxu0 0.0
      %361 = vmatprep.subr.mxu0 0.0
      %362 = vmatpush1.xpose.msra.mxu0 0.0
      %363 = vmatprep.subr.mxu0 0.0
      %364 = vmatpush1.xpose.msra.mxu0 0.0
      %365 = vmatprep.subr.mxu0 0.0
      %366 = vmatpush1.xpose.msra.mxu0 0.0
      %367 = vmatprep.subr.mxu0 0.0
      %368 = vmatpush1.xpose.msra.mxu0 0.0
      %369 = vmatprep.subr.mxu0 0.0
      %370 = vmatpush1.xpose.msra.mxu0 0.0
      %371 = vmatprep.subr.mxu0 0.0
      %372 = vmatpush1.xpose.msra.mxu0 0.0
      %373 = vmatprep.subr.mxu0 0.0
      %374 = vmatpush1.xpose.msra.mxu0 0.0
      %375 = vmatprep.subr.mxu0 0.0
      %376 = vmatpush1.xpose.msra.mxu0 0.0
      %377 = vmatprep.subr.mxu0 0.0
      %378 = vmatpush1.xpose.msra.mxu0 0.0
      %379 = vmatprep.subr.mxu0 0.0
      %380 = vmatpush1.xpose.msra.mxu0 0.0
      %381 = vmatprep.mubr.f32.mxu0 %v163
      %382 = vmatmul.mubr.f32.gmra.mrb[0].mxu0 %v147
      %v383 = vpop.f32.mrb[0].mxu0
      %v384 = vadd.f32 %v314, %v383
      %v385 = vpop.f32.mrb[0].mxu0
      %386 = vdwg.mxu0
      %387 = vmatprep.subr.mxu0 %v164
      %388 = vmatpush1.xpose.msra.mxu0 %v148
      %389 = vmatprep.subr.mxu0 0.0
      %390 = vmatpush1.xpose.msra.mxu0 0.0
      %391 = vmatprep.subr.mxu0 0.0
      %392 = vmatpush1.xpose.msra.mxu0 0.0
      %393 = vmatprep.subr.mxu0 0.0
      %394 = vmatpush1.xpose.msra.mxu0 0.0
      %395 = vmatprep.subr.mxu0 0.0
      %396 = vmatpush1.xpose.msra.mxu0 0.0
      %397 = vmatprep.subr.mxu0 0.0
      %398 = vmatpush1.xpose.msra.mxu0 0.0
      %399 = vmatprep.subr.mxu0 0.0
      %400 = vmatpush1.xpose.msra.mxu0 0.0
      %401 = vmatprep.subr.mxu0 0.0
      %402 = vmatpush1.xpose.msra.mxu0 0.0
      %403 = vmatprep.subr.mxu0 0.0
      %404 = vmatpush1.xpose.msra.mxu0 0.0
      %405 = vmatprep.subr.mxu0 0.0
      %406 = vmatpush1.xpose.msra.mxu0 0.0
      %407 = vmatprep.subr.mxu0 0.0
      %408 = vmatpush1.xpose.msra.mxu0 0.0
      %409 = vmatprep.subr.mxu0 0.0
      %410 = vmatpush1.xpose.msra.mxu0 0.0
      %411 = vmatprep.subr.mxu0 0.0
      %412 = vmatpush1.xpose.msra.mxu0 0.0
      %413 = vmatprep.subr.mxu0 0.0
      %414 = vmatpush1.xpose.msra.mxu0 0.0
      %415 = vmatprep.subr.mxu0 0.0
      %416 = vmatpush1.xpose.msra.mxu0 0.0
      %417 = vmatprep.subr.mxu0 0.0
      %418 = vmatpush1.xpose.msra.mxu0 0.0
      %419 = vmatprep.subr.mxu0 0.0
      %420 = vmatpush1.xpose.msra.mxu0 0.0
      %421 = vmatprep.subr.mxu0 0.0
      %422 = vmatpush1.xpose.msra.mxu0 0.0
      %423 = vmatprep.subr.mxu0 0.0
      %424 = vmatpush1.xpose.msra.mxu0 0.0
      %425 = vmatprep.subr.mxu0 0.0
      %426 = vmatpush1.xpose.msra.mxu0 0.0
      %427 = vmatprep.subr.mxu0 0.0
      %428 = vmatpush1.xpose.msra.mxu0 0.0
      %429 = vmatprep.subr.mxu0 0.0
      %430 = vmatpush1.xpose.msra.mxu0 0.0
      %431 = vmatprep.subr.mxu0 0.0
      %432 = vmatpush1.xpose.msra.mxu0 0.0
      %433 = vmatprep.subr.mxu0 0.0
      %434 = vmatpush1.xpose.msra.mxu0 0.0
      %435 = vmatprep.subr.mxu0 0.0
      %436 = vmatpush1.xpose.msra.mxu0 0.0
      %437 = vmatprep.subr.mxu0 0.0
      %438 = vmatpush1.xpose.msra.mxu0 0.0
      %439 = vmatprep.subr.mxu0 0.0
      %440 = vmatpush1.xpose.msra.mxu0 0.0
      %441 = vmatprep.subr.mxu0 0.0
      %442 = vmatpush1.xpose.msra.mxu0 0.0
      %443 = vmatprep.subr.mxu0 0.0
      %444 = vmatpush1.xpose.msra.mxu0 0.0
      %445 = vmatprep.subr.mxu0 0.0
      %446 = vmatpush1.xpose.msra.mxu0 0.0
      %447 = vmatprep.subr.mxu0 0.0
      %448 = vmatpush1.xpose.msra.mxu0 0.0
      %449 = vmatprep.subr.mxu0 0.0
      %450 = vmatpush1.xpose.msra.mxu0 0.0
      %451 = vmatprep.mubr.f32.mxu0 %v164
      %452 = vmatmul.mubr.f32.gmra.mrb[0].mxu0 %v148
      %v453 = vpop.f32.mrb[0].mxu0
      %v454 = vadd.f32 %v384, %v453
      %v455 = vpop.f32.mrb[0].mxu0
      %456 = vdwg.mxu0
      %457 = vmatprep.subr.mxu0 %v165
      %458 = vmatpush1.xpose.msra.mxu0 %v149
      %459 = vmatprep.subr.mxu0 0.0
      %460 = vmatpush1.xpose.msra.mxu0 0.0
      %461 = vmatprep.subr.mxu0 0.0
      %462 = vmatpush1.xpose.msra.mxu0 0.0
      %463 = vmatprep.subr.mxu0 0.0
      %464 = vmatpush1.xpose.msra.mxu0 0.0
      %465 = vmatprep.subr.mxu0 0.0
      %466 = vmatpush1.xpose.msra.mxu0 0.0
      %467 = vmatprep.subr.mxu0 0.0
      %468 = vmatpush1.xpose.msra.mxu0 0.0
      %469 = vmatprep.subr.mxu0 0.0
      %470 = vmatpush1.xpose.msra.mxu0 0.0
      %471 = vmatprep.subr.mxu0 0.0
      %472 = vmatpush1.xpose.msra.mxu0 0.0
      %473 = vmatprep.subr.mxu0 0.0
      %474 = vmatpush1.xpose.msra.mxu0 0.0
      %475 = vmatprep.subr.mxu0 0.0
      %476 = vmatpush1.xpose.msra.mxu0 0.0
      %477 = vmatprep.subr.mxu0 0.0
      %478 = vmatpush1.xpose.msra.mxu0 0.0
      %479 = vmatprep.subr.mxu0 0.0
      %480 = vmatpush1.xpose.msra.mxu0 0.0
      %481 = vmatprep.subr.mxu0 0.0
      %482 = vmatpush1.xpose.msra.mxu0 0.0
      %483 = vmatprep.subr.mxu0 0.0
      %484 = vmatpush1.xpose.msra.mxu0 0.0
      %485 = vmatprep.subr.mxu0 0.0
      %486 = vmatpush1.xpose.msra.mxu0 0.0
      %487 = vmatprep.subr.mxu0 0.0
      %488 = vmatpush1.xpose.msra.mxu0 0.0
      %489 = vmatprep.subr.mxu0 0.0
      %490 = vmatpush1.xpose.msra.mxu0 0.0
      %491 = vmatprep.subr.mxu0 0.0
      %492 = vmatpush1.xpose.msra.mxu0 0.0
      %493 = vmatprep.subr.mxu0 0.0
      %494 = vmatpush1.xpose.msra.mxu0 0.0
      %495 = vmatprep.subr.mxu0 0.0
      %496 = vmatpush1.xpose.msra.mxu0 0.0
      %497 = vmatprep.subr.mxu0 0.0
      %498 = vmatpush1.xpose.msra.mxu0 0.0
      %499 = vmatprep.subr.mxu0 0.0
      %500 = vmatpush1.xpose.msra.mxu0 0.0
      %501 = vmatprep.subr.mxu0 0.0
      %502 = vmatpush1.xpose.msra.mxu0 0.0
      %503 = vmatprep.subr.mxu0 0.0
      %504 = vmatpush1.xpose.msra.mxu0 0.0
      %505 = vmatprep.subr.mxu0 0.0
      %506 = vmatpush1.xpose.msra.mxu0 0.0
      %507 = vmatprep.subr.mxu0 0.0
      %508 = vmatpush1.xpose.msra.mxu0 0.0
      %509 = vmatprep.subr.mxu0 0.0
      %510 = vmatpush1.xpose.msra.mxu0 0.0
      %511 = vmatprep.subr.mxu0 0.0
      %512 = vmatpush1.xpose.msra.mxu0 0.0
      %513 = vmatprep.subr.mxu0 0.0
      %514 = vmatpush1.xpose.msra.mxu0 0.0
      %515 = vmatprep.subr.mxu0 0.0
      %516 = vmatpush1.xpose.msra.mxu0 0.0
      %517 = vmatprep.subr.mxu0 0.0
      %518 = vmatpush1.xpose.msra.mxu0 0.0
      %519 = vmatprep.subr.mxu0 0.0
      %520 = vmatpush1.xpose.msra.mxu0 0.0
      %521 = vmatprep.mubr.f32.mxu0 %v165
      %522 = vmatmul.mubr.f32.gmra.mrb[0].mxu0 %v149
      %v523 = vpop.f32.mrb[0].mxu0
      %v524 = vadd.f32 %v454, %v523
      %v525 = vpop.f32.mrb[0].mxu0
      %526 = vdwg.mxu0
      %527 = vmatprep.subr.mxu0 %v166
      %528 = vmatpush1.xpose.msra.mxu0 %v150
      %529 = vmatprep.subr.mxu0 0.0
      %530 = vmatpush1.xpose.msra.mxu0 0.0
      %531 = vmatprep.subr.mxu0 0.0
      %532 = vmatpush1.xpose.msra.mxu0 0.0
      %533 = vmatprep.subr.mxu0 0.0
      %534 = vmatpush1.xpose.msra.mxu0 0.0
      %535 = vmatprep.subr.mxu0 0.0
      %536 = vmatpush1.xpose.msra.mxu0 0.0
      %537 = vmatprep.subr.mxu0 0.0
      %538 = vmatpush1.xpose.msra.mxu0 0.0
      %539 = vmatprep.subr.mxu0 0.0
      %540 = vmatpush1.xpose.msra.mxu0 0.0
      %541 = vmatprep.subr.mxu0 0.0
      %542 = vmatpush1.xpose.msra.mxu0 0.0
      %543 = vmatprep.subr.mxu0 0.0
      %544 = vmatpush1.xpose.msra.mxu0 0.0
      %545 = vmatprep.subr.mxu0 0.0
      %546 = vmatpush1.xpose.msra.mxu0 0.0
      %547 = vmatprep.subr.mxu0 0.0
      %548 = vmatpush1.xpose.msra.mxu0 0.0
      %549 = vmatprep.subr.mxu0 0.0
      %550 = vmatpush1.xpose.msra.mxu0 0.0
      %551 = vmatprep.subr.mxu0 0.0
      %552 = vmatpush1.xpose.msra.mxu0 0.0
      %553 = vmatprep.subr.mxu0 0.0
      %554 = vmatpush1.xpose.msra.mxu0 0.0
      %555 = vmatprep.subr.mxu0 0.0
      %556 = vmatpush1.xpose.msra.mxu0 0.0
      %557 = vmatprep.subr.mxu0 0.0
      %558 = vmatpush1.xpose.msra.mxu0 0.0
      %559 = vmatprep.subr.mxu0 0.0
      %560 = vmatpush1.xpose.msra.mxu0 0.0
      %561 = vmatprep.subr.mxu0 0.0
      %562 = vmatpush1.xpose.msra.mxu0 0.0
      %563 = vmatprep.subr.mxu0 0.0
      %564 = vmatpush1.xpose.msra.mxu0 0.0
      %565 = vmatprep.subr.mxu0 0.0
      %566 = vmatpush1.xpose.msra.mxu0 0.0
      %567 = vmatprep.subr.mxu0 0.0
      %568 = vmatpush1.xpose.msra.mxu0 0.0
      %569 = vmatprep.subr.mxu0 0.0
      %570 = vmatpush1.xpose.msra.mxu0 0.0
      %571 = vmatprep.subr.mxu0 0.0
      %572 = vmatpush1.xpose.msra.mxu0 0.0
      %573 = vmatprep.subr.mxu0 0.0
      %574 = vmatpush1.xpose.msra.mxu0 0.0
      %575 = vmatprep.subr.mxu0 0.0
      %576 = vmatpush1.xpose.msra.mxu0 0.0
      %577 = vmatprep.subr.mxu0 0.0
      %578 = vmatpush1.xpose.msra.mxu0 0.0
      %579 = vmatprep.subr.mxu0 0.0
      %580 = vmatpush1.xpose.msra.mxu0 0.0
      %581 = vmatprep.subr.mxu0 0.0
      %582 = vmatpush1.xpose.msra.mxu0 0.0
      %583 = vmatprep.subr.mxu0 0.0
      %584 = vmatpush1.xpose.msra.mxu0 0.0
      %585 = vmatprep.subr.mxu0 0.0
      %586 = vmatpush1.xpose.msra.mxu0 0.0
      %587 = vmatprep.subr.mxu0 0.0
      %588 = vmatpush1.xpose.msra.mxu0 0.0
      %589 = vmatprep.subr.mxu0 0.0
      %590 = vmatpush1.xpose.msra.mxu0 0.0
      %591 = vmatprep.mubr.f32.mxu0 %v166
      %592 = vmatmul.mubr.f32.gmra.mrb[0].mxu0 %v150
      %v593 = vpop.f32.mrb[0].mxu0
      %v594 = vadd.f32 %v524, %v593
      %v595 = vpop.f32.mrb[0].mxu0
      %596 = vdwg.mxu0
      %597 = vmatprep.subr.mxu0 %v167
      %598 = vmatpush1.xpose.msra.mxu0 %v151
      %599 = vmatprep.subr.mxu0 0.0
      %600 = vmatpush1.xpose.msra.mxu0 0.0
      %601 = vmatprep.subr.mxu0 0.0
      %602 = vmatpush1.xpose.msra.mxu0 0.0
      %603 = vmatprep.subr.mxu0 0.0
      %604 = vmatpush1.xpose.msra.mxu0 0.0
      %605 = vmatprep.subr.mxu0 0.0
      %606 = vmatpush1.xpose.msra.mxu0 0.0
      %607 = vmatprep.subr.mxu0 0.0
      %608 = vmatpush1.xpose.msra.mxu0 0.0
      %609 = vmatprep.subr.mxu0 0.0
      %610 = vmatpush1.xpose.msra.mxu0 0.0
      %611 = vmatprep.subr.mxu0 0.0
      %612 = vmatpush1.xpose.msra.mxu0 0.0
      %613 = vmatprep.subr.mxu0 0.0
      %614 = vmatpush1.xpose.msra.mxu0 0.0
      %615 = vmatprep.subr.mxu0 0.0
      %616 = vmatpush1.xpose.msra.mxu0 0.0
      %617 = vmatprep.subr.mxu0 0.0
      %618 = vmatpush1.xpose.msra.mxu0 0.0
      %619 = vmatprep.subr.mxu0 0.0
      %620 = vmatpush1.xpose.msra.mxu0 0.0
      %621 = vmatprep.subr.mxu0 0.0
      %622 = vmatpush1.xpose.msra.mxu0 0.0
      %623 = vmatprep.subr.mxu0 0.0
      %624 = vmatpush1.xpose.msra.mxu0 0.0
      %625 = vmatprep.subr.mxu0 0.0
      %626 = vmatpush1.xpose.msra.mxu0 0.0
      %627 = vmatprep.subr.mxu0 0.0
      %628 = vmatpush1.xpose.msra.mxu0 0.0
      %629 = vmatprep.subr.mxu0 0.0
      %630 = vmatpush1.xpose.msra.mxu0 0.0
      %631 = vmatprep.subr.mxu0 0.0
      %632 = vmatpush1.xpose.msra.mxu0 0.0
      %633 = vmatprep.subr.mxu0 0.0
      %634 = vmatpush1.xpose.msra.mxu0 0.0
      %635 = vmatprep.subr.mxu0 0.0
      %636 = vmatpush1.xpose.msra.mxu0 0.0
      %637 = vmatprep.subr.mxu0 0.0
      %638 = vmatpush1.xpose.msra.mxu0 0.0
      %639 = vmatprep.subr.mxu0 0.0
      %640 = vmatpush1.xpose.msra.mxu0 0.0
      %641 = vmatprep.subr.mxu0 0.0
      %642 = vmatpush1.xpose.msra.mxu0 0.0
      %643 = vmatprep.subr.mxu0 0.0
      %644 = vmatpush1.xpose.msra.mxu0 0.0
      %645 = vmatprep.subr.mxu0 0.0
      %646 = vmatpush1.xpose.msra.mxu0 0.0
      %647 = vmatprep.subr.mxu0 0.0
      %648 = vmatpush1.xpose.msra.mxu0 0.0
      %649 = vmatprep.subr.mxu0 0.0
      %650 = vmatpush1.xpose.msra.mxu0 0.0
      %651 = vmatprep.subr.mxu0 0.0
      %652 = vmatpush1.xpose.msra.mxu0 0.0
      %653 = vmatprep.subr.mxu0 0.0
      %654 = vmatpush1.xpose.msra.mxu0 0.0
      %655 = vmatprep.subr.mxu0 0.0
      %656 = vmatpush1.xpose.msra.mxu0 0.0
      %657 = vmatprep.subr.mxu0 0.0
      %658 = vmatpush1.xpose.msra.mxu0 0.0
      %659 = vmatprep.subr.mxu0 0.0
      %660 = vmatpush1.xpose.msra.mxu0 0.0
      %661 = vmatprep.mubr.f32.mxu0 %v167
      %662 = vmatmul.mubr.f32.gmra.mrb[0].mxu0 %v151
      %v663 = vpop.f32.mrb[0].mxu0
      %v664 = vadd.f32 %v594, %v663
      %v665 = vpop.f32.mrb[0].mxu0
      %666 = vdwg.mxu0
      %667 = vmatprep.subr.mxu0 %v168
      %668 = vmatpush1.xpose.msra.mxu0 %v152
      %669 = vmatprep.subr.mxu0 0.0
      %670 = vmatpush1.xpose.msra.mxu0 0.0
      %671 = vmatprep.subr.mxu0 0.0
      %672 = vmatpush1.xpose.msra.mxu0 0.0
      %673 = vmatprep.subr.mxu0 0.0
      %674 = vmatpush1.xpose.msra.mxu0 0.0
      %675 = vmatprep.subr.mxu0 0.0
      %676 = vmatpush1.xpose.msra.mxu0 0.0
      %677 = vmatprep.subr.mxu0 0.0
      %678 = vmatpush1.xpose.msra.mxu0 0.0
      %679 = vmatprep.subr.mxu0 0.0
      %680 = vmatpush1.xpose.msra.mxu0 0.0
      %681 = vmatprep.subr.mxu0 0.0
      %682 = vmatpush1.xpose.msra.mxu0 0.0
      %683 = vmatprep.subr.mxu0 0.0
      %684 = vmatpush1.xpose.msra.mxu0 0.0
      %685 = vmatprep.subr.mxu0 0.0
      %686 = vmatpush1.xpose.msra.mxu0 0.0
      %687 = vmatprep.subr.mxu0 0.0
      %688 = vmatpush1.xpose.msra.mxu0 0.0
      %689 = vmatprep.subr.mxu0 0.0
      %690 = vmatpush1.xpose.msra.mxu0 0.0
      %691 = vmatprep.subr.mxu0 0.0
      %692 = vmatpush1.xpose.msra.mxu0 0.0
      %693 = vmatprep.subr.mxu0 0.0
      %694 = vmatpush1.xpose.msra.mxu0 0.0
      %695 = vmatprep.subr.mxu0 0.0
      %696 = vmatpush1.xpose.msra.mxu0 0.0
      %697 = vmatprep.subr.mxu0 0.0
      %698 = vmatpush1.xpose.msra.mxu0 0.0
      %699 = vmatprep.subr.mxu0 0.0
      %700 = vmatpush1.xpose.msra.mxu0 0.0
      %701 = vmatprep.subr.mxu0 0.0
      %702 = vmatpush1.xpose.msra.mxu0 0.0
      %703 = vmatprep.subr.mxu0 0.0
      %704 = vmatpush1.xpose.msra.mxu0 0.0
      %705 = vmatprep.subr.mxu0 0.0
      %706 = vmatpush1.xpose.msra.mxu0 0.0
      %707 = vmatprep.subr.mxu0 0.0
      %708 = vmatpush1.xpose.msra.mxu0 0.0
      %709 = vmatprep.subr.mxu0 0.0
      %710 = vmatpush1.xpose.msra.mxu0 0.0
      %711 = vmatprep.subr.mxu0 0.0
      %712 = vmatpush1.xpose.msra.mxu0 0.0
      %713 = vmatprep.subr.mxu0 0.0
      %714 = vmatpush1.xpose.msra.mxu0 0.0
      %715 = vmatprep.subr.mxu0 0.0
      %716 = vmatpush1.xpose.msra.mxu0 0.0
      %717 = vmatprep.subr.mxu0 0.0
      %718 = vmatpush1.xpose.msra.mxu0 0.0
      %719 = vmatprep.subr.mxu0 0.0
      %720 = vmatpush1.xpose.msra.mxu0 0.0
      %721 = vmatprep.subr.mxu0 0.0
      %722 = vmatpush1.xpose.msra.mxu0 0.0
      %723 = vmatprep.subr.mxu0 0.0
      %724 = vmatpush1.xpose.msra.mxu0 0.0
      %725 = vmatprep.subr.mxu0 0.0
      %726 = vmatpush1.xpose.msra.mxu0 0.0
      %727 = vmatprep.subr.mxu0 0.0
      %728 = vmatpush1.xpose.msra.mxu0 0.0
      %729 = vmatprep.subr.mxu0 0.0
      %730 = vmatpush1.xpose.msra.mxu0 0.0
      %731 = vmatprep.mubr.f32.mxu0 %v168
      %732 = vmatmul.mubr.f32.gmra.mrb[0].mxu0 %v152
      %v733 = vpop.f32.mrb[0].mxu0
      %v734 = vadd.f32 %v664, %v733
      %v735 = vpop.f32.mrb[0].mxu0
      %736 = vdwg.mxu0
      %s737 = sld [smem:[#allocation2]]
      %vm738 = vcmask 27648
      %v739 = vsel %vm738, %v734, inf
      %740 = vmin.xlane.f32.xlu0 %v739
      %v741 = vpop.xlane.xlu0 %740
      %v742 = vsub.f32 %v741, %v734
      %v743 = vmul.f32 %v742, 1.442695
      %v744 = vpow.pop %v743
      %v745 = vsel %vm738, %v744, 0.0
      %746 = vadd.xlane.f32.xlu0 %v745
      %v747 = vpop.xlane.xlu0 %746
      %v748 = vrcp.pop %v747
      %v749 = vmul.f32 %v747, %v748
      %v750 = vsub.f32 2.0, %v749
      %v751 = vmul.f32 %v748, %v750
      %v752 = vmul.f32 %v744, %v751
      %v753 = vstv %s737
      %v754 = vmul.f32 %v753, %v752
      %vm755 = vcmask 31744
      %v757 = vsel %vm755, %v754, 0
      %vm759 = vcmask 1043456
      %v760 = vsel %vm759, %v145, 0
      %v762 = vsel %vm759, %v161, 0
      %v764 = vsel %vm759, %v146, 0
      %v766 = vsel %vm759, %v162, 0
      %v768 = vsel %vm759, %v147, 0
      %v770 = vsel %vm759, %v163, 0
      %v772 = vsel %vm759, %v148, 0
      %v774 = vsel %vm759, %v164, 0
      %v776 = vsel %vm759, %v149, 0
      %v778 = vsel %vm759, %v165, 0
      %v780 = vsel %vm759, %v150, 0
      %v782 = vsel %vm759, %v166, 0
      %v784 = vsel %vm759, %v151, 0
      %v786 = vsel %vm759, %v167, 0
      %v788 = vsel %vm759, %v152, 0
      %v790 = vsel %vm759, %v168, 0
      %792 = vmatprep.subr.mxu0 %v762
      %793 = vmatpush1.msra.mxu0 %v760
      %794 = vmatprep.subr.mxu0 0.0
      %795 = vmatpush1.msra.mxu0 0.0
      %796 = vmatprep.subr.mxu0 0.0
      %797 = vmatpush1.msra.mxu0 0.0
      %798 = vmatprep.subr.mxu0 0.0
      %799 = vmatpush1.msra.mxu0 0.0
      %800 = vmatprep.subr.mxu0 0.0
      %801 = vmatpush1.msra.mxu0 0.0
      %802 = vmatprep.subr.mxu0 0.0
      %803 = vmatpush1.msra.mxu0 0.0
      %804 = vmatprep.subr.mxu0 0.0
      %805 = vmatpush1.msra.mxu0 0.0
      %806 = vmatprep.subr.mxu0 0.0
      %807 = vmatpush1.msra.mxu0 0.0
      %808 = vmatprep.subr.mxu0 0.0
      %809 = vmatpush1.msra.mxu0 0.0
      %810 = vmatprep.subr.mxu0 0.0
      %811 = vmatpush1.msra.mxu0 0.0
      %812 = vmatprep.subr.mxu0 0.0
      %813 = vmatpush1.msra.mxu0 0.0
      %814 = vmatprep.subr.mxu0 0.0
      %815 = vmatpush1.msra.mxu0 0.0
      %816 = vmatprep.subr.mxu0 0.0
      %817 = vmatpush1.msra.mxu0 0.0
      %818 = vmatprep.subr.mxu0 0.0
      %819 = vmatpush1.msra.mxu0 0.0
      %820 = vmatprep.subr.mxu0 0.0
      %821 = vmatpush1.msra.mxu0 0.0
      %822 = vmatprep.subr.mxu0 0.0
      %823 = vmatpush1.msra.mxu0 0.0
      %824 = vmatprep.subr.mxu0 0.0
      %825 = vmatpush1.msra.mxu0 0.0
      %826 = vmatprep.subr.mxu0 0.0
      %827 = vmatpush1.msra.mxu0 0.0
      %828 = vmatprep.subr.mxu0 0.0
      %829 = vmatpush1.msra.mxu0 0.0
      %830 = vmatprep.subr.mxu0 0.0
      %831 = vmatpush1.msra.mxu0 0.0
      %832 = vmatprep.subr.mxu0 0.0
      %833 = vmatpush1.msra.mxu0 0.0
      %834 = vmatprep.subr.mxu0 0.0
      %835 = vmatpush1.msra.mxu0 0.0
      %836 = vmatprep.subr.mxu0 0.0
      %837 = vmatpush1.msra.mxu0 0.0
      %838 = vmatprep.subr.mxu0 0.0
      %839 = vmatpush1.msra.mxu0 0.0
      %840 = vmatprep.subr.mxu0 0.0
      %841 = vmatpush1.msra.mxu0 0.0
      %842 = vmatprep.subr.mxu0 0.0
      %843 = vmatpush1.msra.mxu0 0.0
      %844 = vmatprep.subr.mxu0 0.0
      %845 = vmatpush1.msra.mxu0 0.0
      %846 = vmatprep.subr.mxu0 0.0
      %847 = vmatpush1.msra.mxu0 0.0
      %848 = vmatprep.subr.mxu0 0.0
      %849 = vmatpush1.msra.mxu0 0.0
      %850 = vmatprep.subr.mxu0 0.0
      %851 = vmatpush1.msra.mxu0 0.0
      %852 = vmatprep.subr.mxu0 0.0
      %853 = vmatpush1.msra.mxu0 0.0
      %854 = vmatprep.subr.mxu0 0.0
      %855 = vmatpush1.msra.mxu0 0.0
      %856 = vmatprep.mubr.f32.mxu0 0.0
      %857 = vmatmul.mubr.f32.gmra.mrb[0].mxu0 %v757
      %v858 = vpop.f32.mrb[0].mxu0
      %v859 = vadd.f32 %v145, %v858
      %v860 = vpop.f32.mrb[0].mxu0
      %v861 = vadd.f32 %v161, %v860
      %862 = vdwg.mxu0
      %863 = vmatprep.subr.mxu0 %v766
      %864 = vmatpush1.msra.mxu0 %v764
      %865 = vmatprep.subr.mxu0 0.0
      %866 = vmatpush1.msra.mxu0 0.0
      %867 = vmatprep.subr.mxu0 0.0
      %868 = vmatpush1.msra.mxu0 0.0
      %869 = vmatprep.subr.mxu0 0.0
      %870 = vmatpush1.msra.mxu0 0.0
      %871 = vmatprep.subr.mxu0 0.0
      %872 = vmatpush1.msra.mxu0 0.0
      %873 = vmatprep.subr.mxu0 0.0
      %874 = vmatpush1.msra.mxu0 0.0
      %875 = vmatprep.subr.mxu0 0.0
      %876 = vmatpush1.msra.mxu0 0.0
      %877 = vmatprep.subr.mxu0 0.0
      %878 = vmatpush1.msra.mxu0 0.0
      %879 = vmatprep.subr.mxu0 0.0
      %880 = vmatpush1.msra.mxu0 0.0
      %881 = vmatprep.subr.mxu0 0.0
      %882 = vmatpush1.msra.mxu0 0.0
      %883 = vmatprep.subr.mxu0 0.0
      %884 = vmatpush1.msra.mxu0 0.0
      %885 = vmatprep.subr.mxu0 0.0
      %886 = vmatpush1.msra.mxu0 0.0
      %887 = vmatprep.subr.mxu0 0.0
      %888 = vmatpush1.msra.mxu0 0.0
      %889 = vmatprep.subr.mxu0 0.0
      %890 = vmatpush1.msra.mxu0 0.0
      %891 = vmatprep.subr.mxu0 0.0
      %892 = vmatpush1.msra.mxu0 0.0
      %893 = vmatprep.subr.mxu0 0.0
      %894 = vmatpush1.msra.mxu0 0.0
      %895 = vmatprep.subr.mxu0 0.0
      %896 = vmatpush1.msra.mxu0 0.0
      %897 = vmatprep.subr.mxu0 0.0
      %898 = vmatpush1.msra.mxu0 0.0
      %899 = vmatprep.subr.mxu0 0.0
      %900 = vmatpush1.msra.mxu0 0.0
      %901 = vmatprep.subr.mxu0 0.0
      %902 = vmatpush1.msra.mxu0 0.0
      %903 = vmatprep.subr.mxu0 0.0
      %904 = vmatpush1.msra.mxu0 0.0
      %905 = vmatprep.subr.mxu0 0.0
      %906 = vmatpush1.msra.mxu0 0.0
      %907 = vmatprep.subr.mxu0 0.0
      %908 = vmatpush1.msra.mxu0 0.0
      %909 = vmatprep.subr.mxu0 0.0
      %910 = vmatpush1.msra.mxu0 0.0
      %911 = vmatprep.subr.mxu0 0.0
      %912 = vmatpush1.msra.mxu0 0.0
      %913 = vmatprep.subr.mxu0 0.0
      %914 = vmatpush1.msra.mxu0 0.0
      %915 = vmatprep.subr.mxu0 0.0
      %916 = vmatpush1.msra.mxu0 0.0
      %917 = vmatprep.subr.mxu0 0.0
      %918 = vmatpush1.msra.mxu0 0.0
      %919 = vmatprep.subr.mxu0 0.0
      %920 = vmatpush1.msra.mxu0 0.0
      %921 = vmatprep.subr.mxu0 0.0
      %922 = vmatpush1.msra.mxu0 0.0
      %923 = vmatprep.subr.mxu0 0.0
      %924 = vmatpush1.msra.mxu0 0.0
      %925 = vmatprep.subr.mxu0 0.0
      %926 = vmatpush1.msra.mxu0 0.0
      %927 = vmatprep.mubr.f32.mxu0 0.0
      %928 = vmatmul.mubr.f32.gmra.mrb[0].mxu0 %v757
      %v929 = vpop.f32.mrb[0].mxu0
      %v930 = vadd.f32 %v146, %v929
      %v931 = vpop.f32.mrb[0].mxu0
      %v932 = vadd.f32 %v162, %v931
      %933 = vdwg.mxu0
      %934 = vmatprep.subr.mxu0 %v770
      %935 = vmatpush1.msra.mxu0 %v768
      %936 = vmatprep.subr.mxu0 0.0
      %937 = vmatpush1.msra.mxu0 0.0
      %938 = vmatprep.subr.mxu0 0.0
      %939 = vmatpush1.msra.mxu0 0.0
      %940 = vmatprep.subr.mxu0 0.0
      %941 = vmatpush1.msra.mxu0 0.0
      %942 = vmatprep.subr.mxu0 0.0
      %943 = vmatpush1.msra.mxu0 0.0
      %944 = vmatprep.subr.mxu0 0.0
      %945 = vmatpush1.msra.mxu0 0.0
      %946 = vmatprep.subr.mxu0 0.0
      %947 = vmatpush1.msra.mxu0 0.0
      %948 = vmatprep.subr.mxu0 0.0
      %949 = vmatpush1.msra.mxu0 0.0
      %950 = vmatprep.subr.mxu0 0.0
      %951 = vmatpush1.msra.mxu0 0.0
      %952 = vmatprep.subr.mxu0 0.0
      %953 = vmatpush1.msra.mxu0 0.0
      %954 = vmatprep.subr.mxu0 0.0
      %955 = vmatpush1.msra.mxu0 0.0
      %956 = vmatprep.subr.mxu0 0.0
      %957 = vmatpush1.msra.mxu0 0.0
      %958 = vmatprep.subr.mxu0 0.0
      %959 = vmatpush1.msra.mxu0 0.0
      %960 = vmatprep.subr.mxu0 0.0
      %961 = vmatpush1.msra.mxu0 0.0
      %962 = vmatprep.subr.mxu0 0.0
      %963 = vmatpush1.msra.mxu0 0.0
      %964 = vmatprep.subr.mxu0 0.0
      %965 = vmatpush1.msra.mxu0 0.0
      %966 = vmatprep.subr.mxu0 0.0
      %967 = vmatpush1.msra.mxu0 0.0
      %968 = vmatprep.subr.mxu0 0.0
      %969 = vmatpush1.msra.mxu0 0.0
      %970 = vmatprep.subr.mxu0 0.0
      %971 = vmatpush1.msra.mxu0 0.0
      %972 = vmatprep.subr.mxu0 0.0
      %973 = vmatpush1.msra.mxu0 0.0
      %974 = vmatprep.subr.mxu0 0.0
      %975 = vmatpush1.msra.mxu0 0.0
      %976 = vmatprep.subr.mxu0 0.0
      %977 = vmatpush1.msra.mxu0 0.0
      %978 = vmatprep.subr.mxu0 0.0
      %979 = vmatpush1.msra.mxu0 0.0
      %980 = vmatprep.subr.mxu0 0.0
      %981 = vmatpush1.msra.mxu0 0.0
      %982 = vmatprep.subr.mxu0 0.0
      %983 = vmatpush1.msra.mxu0 0.0
      %984 = vmatprep.subr.mxu0 0.0
      %985 = vmatpush1.msra.mxu0 0.0
      %986 = vmatprep.subr.mxu0 0.0
      %987 = vmatpush1.msra.mxu0 0.0
      %988 = vmatprep.subr.mxu0 0.0
      %989 = vmatpush1.msra.mxu0 0.0
      %990 = vmatprep.subr.mxu0 0.0
      %991 = vmatpush1.msra.mxu0 0.0
      %992 = vmatprep.subr.mxu0 0.0
      %993 = vmatpush1.msra.mxu0 0.0
      %994 = vmatprep.subr.mxu0 0.0
      %995 = vmatpush1.msra.mxu0 0.0
      %996 = vmatprep.subr.mxu0 0.0
      %997 = vmatpush1.msra.mxu0 0.0
      %998 = vmatprep.mubr.f32.mxu0 0.0
      %999 = vmatmul.mubr.f32.gmra.mrb[0].mxu0 %v757
      %v1000 = vpop.f32.mrb[0].mxu0
      %v1001 = vadd.f32 %v147, %v1000
      %v1002 = vpop.f32.mrb[0].mxu0
      %v1003 = vadd.f32 %v163, %v1002
      %1004 = vdwg.mxu0
      %1005 = vmatprep.subr.mxu0 %v774
      %1006 = vmatpush1.msra.mxu0 %v772
      %1007 = vmatprep.subr.mxu0 0.0
      %1008 = vmatpush1.msra.mxu0 0.0
      %1009 = vmatprep.subr.mxu0 0.0
      %1010 = vmatpush1.msra.mxu0 0.0
      %1011 = vmatprep.subr.mxu0 0.0
      %1012 = vmatpush1.msra.mxu0 0.0
      %1013 = vmatprep.subr.mxu0 0.0
      %1014 = vmatpush1.msra.mxu0 0.0
      %1015 = vmatprep.subr.mxu0 0.0
      %1016 = vmatpush1.msra.mxu0 0.0
      %1017 = vmatprep.subr.mxu0 0.0
      %1018 = vmatpush1.msra.mxu0 0.0
      %1019 = vmatprep.subr.mxu0 0.0
      %1020 = vmatpush1.msra.mxu0 0.0
      %1021 = vmatprep.subr.mxu0 0.0
      %1022 = vmatpush1.msra.mxu0 0.0
      %1023 = vmatprep.subr.mxu0 0.0
      %1024 = vmatpush1.msra.mxu0 0.0
      %1025 = vmatprep.subr.mxu0 0.0
      %1026 = vmatpush1.msra.mxu0 0.0
      %1027 = vmatprep.subr.mxu0 0.0
      %1028 = vmatpush1.msra.mxu0 0.0
      %1029 = vmatprep.subr.mxu0 0.0
      %1030 = vmatpush1.msra.mxu0 0.0
      %1031 = vmatprep.subr.mxu0 0.0
      %1032 = vmatpush1.msra.mxu0 0.0
      %1033 = vmatprep.subr.mxu0 0.0
      %1034 = vmatpush1.msra.mxu0 0.0
      %1035 = vmatprep.subr.mxu0 0.0
      %1036 = vmatpush1.msra.mxu0 0.0
      %1037 = vmatprep.subr.mxu0 0.0
      %1038 = vmatpush1.msra.mxu0 0.0
      %1039 = vmatprep.subr.mxu0 0.0
      %1040 = vmatpush1.msra.mxu0 0.0
      %1041 = vmatprep.subr.mxu0 0.0
      %1042 = vmatpush1.msra.mxu0 0.0
      %1043 = vmatprep.subr.mxu0 0.0
      %1044 = vmatpush1.msra.mxu0 0.0
      %1045 = vmatprep.subr.mxu0 0.0
      %1046 = vmatpush1.msra.mxu0 0.0
      %1047 = vmatprep.subr.mxu0 0.0
      %1048 = vmatpush1.msra.mxu0 0.0
      %1049 = vmatprep.subr.mxu0 0.0
      %1050 = vmatpush1.msra.mxu0 0.0
      %1051 = vmatprep.subr.mxu0 0.0
      %1052 = vmatpush1.msra.mxu0 0.0
      %1053 = vmatprep.subr.mxu0 0.0
      %1054 = vmatpush1.msra.mxu0 0.0
      %1055 = vmatprep.subr.mxu0 0.0
      %1056 = vmatpush1.msra.mxu0 0.0
      %1057 = vmatprep.subr.mxu0 0.0
      %1058 = vmatpush1.msra.mxu0 0.0
      %1059 = vmatprep.subr.mxu0 0.0
      %1060 = vmatpush1.msra.mxu0 0.0
      %1061 = vmatprep.subr.mxu0 0.0
      %1062 = vmatpush1.msra.mxu0 0.0
      %1063 = vmatprep.subr.mxu0 0.0
      %1064 = vmatpush1.msra.mxu0 0.0
      %1065 = vmatprep.subr.mxu0 0.0
      %1066 = vmatpush1.msra.mxu0 0.0
      %1067 = vmatprep.subr.mxu0 0.0
      %1068 = vmatpush1.msra.mxu0 0.0
      %1069 = vmatprep.mubr.f32.mxu0 0.0
      %1070 = vmatmul.mubr.f32.gmra.mrb[0].mxu0 %v757
      %v1071 = vpop.f32.mrb[0].mxu0
      %v1072 = vadd.f32 %v148, %v1071
      %v1073 = vpop.f32.mrb[0].mxu0
      %v1074 = vadd.f32 %v164, %v1073
      %1075 = vdwg.mxu0
      %1076 = vmatprep.subr.mxu0 %v778
      %1077 = vmatpush1.msra.mxu0 %v776
      %1078 = vmatprep.subr.mxu0 0.0
      %1079 = vmatpush1.msra.mxu0 0.0
      %1080 = vmatprep.subr.mxu0 0.0
      %1081 = vmatpush1.msra.mxu0 0.0
      %1082 = vmatprep.subr.mxu0 0.0
      %1083 = vmatpush1.msra.mxu0 0.0
      %1084 = vmatprep.subr.mxu0 0.0
      %1085 = vmatpush1.msra.mxu0 0.0
      %1086 = vmatprep.subr.mxu0 0.0
      %1087 = vmatpush1.msra.mxu0 0.0
      %1088 = vmatprep.subr.mxu0 0.0
      %1089 = vmatpush1.msra.mxu0 0.0
      %1090 = vmatprep.subr.mxu0 0.0
      %1091 = vmatpush1.msra.mxu0 0.0
      %1092 = vmatprep.subr.mxu0 0.0
      %1093 = vmatpush1.msra.mxu0 0.0
      %1094 = vmatprep.subr.mxu0 0.0
      %1095 = vmatpush1.msra.mxu0 0.0
      %1096 = vmatprep.subr.mxu0 0.0
      %1097 = vmatpush1.msra.mxu0 0.0
      %1098 = vmatprep.subr.mxu0 0.0
      %1099 = vmatpush1.msra.mxu0 0.0
      %1100 = vmatprep.subr.mxu0 0.0
      %1101 = vmatpush1.msra.mxu0 0.0
      %1102 = vmatprep.subr.mxu0 0.0
      %1103 = vmatpush1.msra.mxu0 0.0
      %1104 = vmatprep.subr.mxu0 0.0
      %1105 = vmatpush1.msra.mxu0 0.0
      %1106 = vmatprep.subr.mxu0 0.0
      %1107 = vmatpush1.msra.mxu0 0.0
      %1108 = vmatprep.subr.mxu0 0.0
      %1109 = vmatpush1.msra.mxu0 0.0
      %1110 = vmatprep.subr.mxu0 0.0
      %1111 = vmatpush1.msra.mxu0 0.0
      %1112 = vmatprep.subr.mxu0 0.0
      %1113 = vmatpush1.msra.mxu0 0.0
      %1114 = vmatprep.subr.mxu0 0.0
      %1115 = vmatpush1.msra.mxu0 0.0
      %1116 = vmatprep.subr.mxu0 0.0
      %1117 = vmatpush1.msra.mxu0 0.0
      %1118 = vmatprep.subr.mxu0 0.0
      %1119 = vmatpush1.msra.mxu0 0.0
      %1120 = vmatprep.subr.mxu0 0.0
      %1121 = vmatpush1.msra.mxu0 0.0
      %1122 = vmatprep.subr.mxu0 0.0
      %1123 = vmatpush1.msra.mxu0 0.0
      %1124 = vmatprep.subr.mxu0 0.0
      %1125 = vmatpush1.msra.mxu0 0.0
      %1126 = vmatprep.subr.mxu0 0.0
      %1127 = vmatpush1.msra.mxu0 0.0
      %1128 = vmatprep.subr.mxu0 0.0
      %1129 = vmatpush1.msra.mxu0 0.0
      %1130 = vmatprep.subr.mxu0 0.0
      %1131 = vmatpush1.msra.mxu0 0.0
      %1132 = vmatprep.subr.mxu0 0.0
      %1133 = vmatpush1.msra.mxu0 0.0
      %1134 = vmatprep.subr.mxu0 0.0
      %1135 = vmatpush1.msra.mxu0 0.0
      %1136 = vmatprep.subr.mxu0 0.0
      %1137 = vmatpush1.msra.mxu0 0.0
      %1138 = vmatprep.subr.mxu0 0.0
      %1139 = vmatpush1.msra.mxu0 0.0
      %1140 = vmatprep.mubr.f32.mxu0 0.0
      %1141 = vmatmul.mubr.f32.gmra.mrb[0].mxu0 %v757
      %v1142 = vpop.f32.mrb[0].mxu0
      %v1143 = vadd.f32 %v149, %v1142
      %v1144 = vpop.f32.mrb[0].mxu0
      %v1145 = vadd.f32 %v165, %v1144
      %1146 = vdwg.mxu0
      %1147 = vmatprep.subr.mxu0 %v782
      %1148 = vmatpush1.msra.mxu0 %v780
      %1149 = vmatprep.subr.mxu0 0.0
      %1150 = vmatpush1.msra.mxu0 0.0
      %1151 = vmatprep.subr.mxu0 0.0
      %1152 = vmatpush1.msra.mxu0 0.0
      %1153 = vmatprep.subr.mxu0 0.0
      %1154 = vmatpush1.msra.mxu0 0.0
      %1155 = vmatprep.subr.mxu0 0.0
      %1156 = vmatpush1.msra.mxu0 0.0
      %1157 = vmatprep.subr.mxu0 0.0
      %1158 = vmatpush1.msra.mxu0 0.0
      %1159 = vmatprep.subr.mxu0 0.0
      %1160 = vmatpush1.msra.mxu0 0.0
      %1161 = vmatprep.subr.mxu0 0.0
      %1162 = vmatpush1.msra.mxu0 0.0
      %1163 = vmatprep.subr.mxu0 0.0
      %1164 = vmatpush1.msra.mxu0 0.0
      %1165 = vmatprep.subr.mxu0 0.0
      %1166 = vmatpush1.msra.mxu0 0.0
      %1167 = vmatprep.subr.mxu0 0.0
      %1168 = vmatpush1.msra.mxu0 0.0
      %1169 = vmatprep.subr.mxu0 0.0
      %1170 = vmatpush1.msra.mxu0 0.0
      %1171 = vmatprep.subr.mxu0 0.0
      %1172 = vmatpush1.msra.mxu0 0.0
      %1173 = vmatprep.subr.mxu0 0.0
      %1174 = vmatpush1.msra.mxu0 0.0
      %1175 = vmatprep.subr.mxu0 0.0
      %1176 = vmatpush1.msra.mxu0 0.0
      %1177 = vmatprep.subr.mxu0 0.0
      %1178 = vmatpush1.msra.mxu0 0.0
      %1179 = vmatprep.subr.mxu0 0.0
      %1180 = vmatpush1.msra.mxu0 0.0
      %1181 = vmatprep.subr.mxu0 0.0
      %1182 = vmatpush1.msra.mxu0 0.0
      %1183 = vmatprep.subr.mxu0 0.0
      %1184 = vmatpush1.msra.mxu0 0.0
      %1185 = vmatprep.subr.mxu0 0.0
      %1186 = vmatpush1.msra.mxu0 0.0
      %1187 = vmatprep.subr.mxu0 0.0
      %1188 = vmatpush1.msra.mxu0 0.0
      %1189 = vmatprep.subr.mxu0 0.0
      %1190 = vmatpush1.msra.mxu0 0.0
      %1191 = vmatprep.subr.mxu0 0.0
      %1192 = vmatpush1.msra.mxu0 0.0
      %1193 = vmatprep.subr.mxu0 0.0
      %1194 = vmatpush1.msra.mxu0 0.0
      %1195 = vmatprep.subr.mxu0 0.0
      %1196 = vmatpush1.msra.mxu0 0.0
      %1197 = vmatprep.subr.mxu0 0.0
      %1198 = vmatpush1.msra.mxu0 0.0
      %1199 = vmatprep.subr.mxu0 0.0
      %1200 = vmatpush1.msra.mxu0 0.0
      %1201 = vmatprep.subr.mxu0 0.0
      %1202 = vmatpush1.msra.mxu0 0.0
      %1203 = vmatprep.subr.mxu0 0.0
      %1204 = vmatpush1.msra.mxu0 0.0
      %1205 = vmatprep.subr.mxu0 0.0
      %1206 = vmatpush1.msra.mxu0 0.0
      %1207 = vmatprep.subr.mxu0 0.0
      %1208 = vmatpush1.msra.mxu0 0.0
      %1209 = vmatprep.subr.mxu0 0.0
      %1210 = vmatpush1.msra.mxu0 0.0
      %1211 = vmatprep.mubr.f32.mxu0 0.0
      %1212 = vmatmul.mubr.f32.gmra.mrb[0].mxu0 %v757
      %v1213 = vpop.f32.mrb[0].mxu0
      %v1214 = vadd.f32 %v150, %v1213
      %v1215 = vpop.f32.mrb[0].mxu0
      %v1216 = vadd.f32 %v166, %v1215
      %1217 = vdwg.mxu0
      %1218 = vmatprep.subr.mxu0 %v786
      %1219 = vmatpush1.msra.mxu0 %v784
      %1220 = vmatprep.subr.mxu0 0.0
      %1221 = vmatpush1.msra.mxu0 0.0
      %1222 = vmatprep.subr.mxu0 0.0
      %1223 = vmatpush1.msra.mxu0 0.0
      %1224 = vmatprep.subr.mxu0 0.0
      %1225 = vmatpush1.msra.mxu0 0.0
      %1226 = vmatprep.subr.mxu0 0.0
      %1227 = vmatpush1.msra.mxu0 0.0
      %1228 = vmatprep.subr.mxu0 0.0
      %1229 = vmatpush1.msra.mxu0 0.0
      %1230 = vmatprep.subr.mxu0 0.0
      %1231 = vmatpush1.msra.mxu0 0.0
      %1232 = vmatprep.subr.mxu0 0.0
      %1233 = vmatpush1.msra.mxu0 0.0
      %1234 = vmatprep.subr.mxu0 0.0
      %1235 = vmatpush1.msra.mxu0 0.0
      %1236 = vmatprep.subr.mxu0 0.0
      %1237 = vmatpush1.msra.mxu0 0.0
      %1238 = vmatprep.subr.mxu0 0.0
      %1239 = vmatpush1.msra.mxu0 0.0
      %1240 = vmatprep.subr.mxu0 0.0
      %1241 = vmatpush1.msra.mxu0 0.0
      %1242 = vmatprep.subr.mxu0 0.0
      %1243 = vmatpush1.msra.mxu0 0.0
      %1244 = vmatprep.subr.mxu0 0.0
      %1245 = vmatpush1.msra.mxu0 0.0
      %1246 = vmatprep.subr.mxu0 0.0
      %1247 = vmatpush1.msra.mxu0 0.0
      %1248 = vmatprep.subr.mxu0 0.0
      %1249 = vmatpush1.msra.mxu0 0.0
      %1250 = vmatprep.subr.mxu0 0.0
      %1251 = vmatpush1.msra.mxu0 0.0
      %1252 = vmatprep.subr.mxu0 0.0
      %1253 = vmatpush1.msra.mxu0 0.0
      %1254 = vmatprep.subr.mxu0 0.0
      %1255 = vmatpush1.msra.mxu0 0.0
      %1256 = vmatprep.subr.mxu0 0.0
      %1257 = vmatpush1.msra.mxu0 0.0
      %1258 = vmatprep.subr.mxu0 0.0
      %1259 = vmatpush1.msra.mxu0 0.0
      %1260 = vmatprep.subr.mxu0 0.0
      %1261 = vmatpush1.msra.mxu0 0.0
      %1262 = vmatprep.subr.mxu0 0.0
      %1263 = vmatpush1.msra.mxu0 0.0
      %1264 = vmatprep.subr.mxu0 0.0
      %1265 = vmatpush1.msra.mxu0 0.0
      %1266 = vmatprep.subr.mxu0 0.0
      %1267 = vmatpush1.msra.mxu0 0.0
      %1268 = vmatprep.subr.mxu0 0.0
      %1269 = vmatpush1.msra.mxu0 0.0
      %1270 = vmatprep.subr.mxu0 0.0
      %1271 = vmatpush1.msra.mxu0 0.0
      %1272 = vmatprep.subr.mxu0 0.0
      %1273 = vmatpush1.msra.mxu0 0.0
      %1274 = vmatprep.subr.mxu0 0.0
      %1275 = vmatpush1.msra.mxu0 0.0
      %1276 = vmatprep.subr.mxu0 0.0
      %1277 = vmatpush1.msra.mxu0 0.0
      %1278 = vmatprep.subr.mxu0 0.0
      %1279 = vmatpush1.msra.mxu0 0.0
      %1280 = vmatprep.subr.mxu0 0.0
      %1281 = vmatpush1.msra.mxu0 0.0
      %1282 = vmatprep.mubr.f32.mxu0 0.0
      %1283 = vmatmul.mubr.f32.gmra.mrb[0].mxu0 %v757
      %v1284 = vpop.f32.mrb[0].mxu0
      %v1285 = vadd.f32 %v151, %v1284
      %v1286 = vpop.f32.mrb[0].mxu0
      %v1287 = vadd.f32 %v167, %v1286
      %1288 = vdwg.mxu0
      %1289 = vmatprep.subr.mxu0 %v790
      %1290 = vmatpush1.msra.mxu0 %v788
      %1291 = vmatprep.subr.mxu0 0.0
      %1292 = vmatpush1.msra.mxu0 0.0
      %1293 = vmatprep.subr.mxu0 0.0
      %1294 = vmatpush1.msra.mxu0 0.0
      %1295 = vmatprep.subr.mxu0 0.0
      %1296 = vmatpush1.msra.mxu0 0.0
      %1297 = vmatprep.subr.mxu0 0.0
      %1298 = vmatpush1.msra.mxu0 0.0
      %1299 = vmatprep.subr.mxu0 0.0
      %1300 = vmatpush1.msra.mxu0 0.0
      %1301 = vmatprep.subr.mxu0 0.0
      %1302 = vmatpush1.msra.mxu0 0.0
      %1303 = vmatprep.subr.mxu0 0.0
      %1304 = vmatpush1.msra.mxu0 0.0
      %1305 = vmatprep.subr.mxu0 0.0
      %1306 = vmatpush1.msra.mxu0 0.0
      %1307 = vmatprep.subr.mxu0 0.0
      %1308 = vmatpush1.msra.mxu0 0.0
      %1309 = vmatprep.subr.mxu0 0.0
      %1310 = vmatpush1.msra.mxu0 0.0
      %1311 = vmatprep.subr.mxu0 0.0
      %1312 = vmatpush1.msra.mxu0 0.0
      %1313 = vmatprep.subr.mxu0 0.0
      %1314 = vmatpush1.msra.mxu0 0.0
      %1315 = vmatprep.subr.mxu0 0.0
      %1316 = vmatpush1.msra.mxu0 0.0
      %1317 = vmatprep.subr.mxu0 0.0
      %1318 = vmatpush1.msra.mxu0 0.0
      %1319 = vmatprep.subr.mxu0 0.0
      %1320 = vmatpush1.msra.mxu0 0.0
      %1321 = vmatprep.subr.mxu0 0.0
      %1322 = vmatpush1.msra.mxu0 0.0
      %1323 = vmatprep.subr.mxu0 0.0
      %1324 = vmatpush1.msra.mxu0 0.0
      %1325 = vmatprep.subr.mxu0 0.0
      %1326 = vmatpush1.msra.mxu0 0.0
      %1327 = vmatprep.subr.mxu0 0.0
      %1328 = vmatpush1.msra.mxu0 0.0
      %1329 = vmatprep.subr.mxu0 0.0
      %1330 = vmatpush1.msra.mxu0 0.0
      %1331 = vmatprep.subr.mxu0 0.0
      %1332 = vmatpush1.msra.mxu0 0.0
      %1333 = vmatprep.subr.mxu0 0.0
      %1334 = vmatpush1.msra.mxu0 0.0
      %1335 = vmatprep.subr.mxu0 0.0
      %1336 = vmatpush1.msra.mxu0 0.0
      %1337 = vmatprep.subr.mxu0 0.0
      %1338 = vmatpush1.msra.mxu0 0.0
      %1339 = vmatprep.subr.mxu0 0.0
      %1340 = vmatpush1.msra.mxu0 0.0
      %1341 = vmatprep.subr.mxu0 0.0
      %1342 = vmatpush1.msra.mxu0 0.0
      %1343 = vmatprep.subr.mxu0 0.0
      %1344 = vmatpush1.msra.mxu0 0.0
      %1345 = vmatprep.subr.mxu0 0.0
      %1346 = vmatpush1.msra.mxu0 0.0
      %1347 = vmatprep.subr.mxu0 0.0
      %1348 = vmatpush1.msra.mxu0 0.0
      %1349 = vmatprep.subr.mxu0 0.0
      %1350 = vmatpush1.msra.mxu0 0.0
      %1351 = vmatprep.subr.mxu0 0.0
      %1352 = vmatpush1.msra.mxu0 0.0
      %1353 = vmatprep.mubr.f32.mxu0 0.0
      %1354 = vmatmul.mubr.f32.gmra.mrb[0].mxu0 %v757
      %v1355 = vpop.f32.mrb[0].mxu0
      %v1356 = vadd.f32 %v152, %v1355
      %v1357 = vpop.f32.mrb[0].mxu0
      %v1358 = vadd.f32 %v168, %v1357
      %1359 = vdwg.mxu0
      %v1376 = vcombine.low %v859, %v861
      %v1377 = vcombine.low %v930, %v932
      %v1378 = vcombine.low %v1001, %v1003
      %v1379 = vcombine.low %v1072, %v1074
      %v1380 = vcombine.low %v1143, %v1145
      %v1381 = vcombine.low %v1214, %v1216
      %v1382 = vcombine.low %v1285, %v1287
      %v1383 = vcombine.low %v1356, %v1358
      %1392 = vst [vmem:[%s144] sm:$0xff] %v1376
      %1393 = vst [vmem:[%s144 + $0x8] sm:$0xff] %v1377
      %1394 = vst [vmem:[%s144 + $0x10] sm:$0xff] %v1378
      %1395 = vst [vmem:[%s144 + $0x18] sm:$0xff] %v1379
      %1396 = vst [vmem:[%s144 + $0x20] sm:$0xff] %v1380
      %1397 = vst [vmem:[%s144 + $0x28] sm:$0xff] %v1381
      %1398 = vst [vmem:[%s144 + $0x30] sm:$0xff] %v1382
      %1399 = vst [vmem:[%s144 + $0x38] sm:$0xff] %v1383
      %p1400 = scmp.lt.s32.totalorder %s14, 1
      %s1401 = scalar_select %p1400, %s14, 1
      %s1402 = smul.addr %s1401, 16
      %s1403 = smul.addr %s1402, 4
      %s1404 = scalar_lea.vmem %s2, %s1403
      // Predicated region
      $region29: #{cam_module.1} parent=27 // pred_check
        %p1405 = pneg %p79
      $region30: #{cam_module.1} parent=27 // pred_check_branch
        %1407 = sbr.rel (%p1405) target = $region32
      $region31: #{cam_module.1} parent=27 // pred_region
        _
      $region32: #{cam_module.1} parent=27 // pred_fallthru
        _
    $region28: #{cam_module.1} parent=5 // pred_fallthru
      _
    %p1408 = scmp.le.s32.totalorder 2, %s9
    // Predicated region
    $region33: #{cam_module.1} parent=5 // pred_check
      %p1409 = pneg %p1408
    $region34: #{cam_module.1} parent=5 // pred_check_branch
      %1411 = sbr.rel (%p1409) target = $region36
    $region35: #{cam_module.1} parent=5 // pred_region
      %s1412 = ssub.s32 %s9, 2
      // Predicated region
      $region37: #{cam_module.1} parent=35 // pred_check
        %p1413 = pneg %p85
      $region38: #{cam_module.1} parent=35 // pred_check_branch
        %1415 = sbr.rel (%p1413) target = $region40
      $region39: #{cam_module.1} parent=35 // pred_region
        %p1416 = scmp.lt.s32.totalorder %s15, 1
        %s1417 = scalar_select %p1416, %s15, 1
        %s1418 = smul.addr %s1417, 16
        %s1419 = smul.addr %s1418, 4
        %s1420 = scalar_lea.vmem %s2, %s1419
      $region40: #{cam_module.1} parent=35 // pred_fallthru
        _
    $region36: #{cam_module.1} parent=5 // pred_fallthru
      _
  $region6: #{cam_module.1} parent=0 // loop_footer
    %s13 = sadd.s32 1, %s9
  $region7: #{cam_module.1} parent=0 // loop_footer_branch
    %8 = sbr.rel target = $region3
  $region8: #{cam_module.1} parent=0 // loop_exit
    _

</llo_original>
